<compile_context>
chip_gen: v5e
topology: v5e:2x2
jax: 0.10.0
libtpu: 0.0.40
codegen_flags: <defaults>
</compile_context>

<pallas_src>
import jax
import jax.numpy as jnp
from jax.experimental import pallas as pl
from jax.experimental.pallas import tpu as pltpu


def _round_up(x, m):
    return (x + m - 1) // m * m


def _vmem_capacity_bytes():
    """Per-core VMEM capacity, with a conservative fallback (v7x: 64 MiB)."""
    try:
        info = pltpu.get_tpu_info()
        cap = getattr(info, "vmem_capacity_bytes", None)
        if cap:
            return int(cap)
    except Exception:
        pass
    return 64 * 1024 * 1024


def _tile_working_set_bytes(tn, td, k_pad, out_bytes):
    patches = tn * k_pad * 2       # bf16
    weight = k_pad * td * 2        # bf16
    posb = tn * td * 4             # f32
    out = tn * td * out_bytes
    return 2 * (patches + weight + posb + out)   # double-buffered


def _choose_tiles(n, d_pad, k_pad, out_bytes, budget):
    """Largest (TN, TD) whose double-buffered set fits the VMEM budget.
    TD divides D_pad and is a multiple of 128 (lane-dense stores);
    TN is a multiple of 8 (sublane-aligned)."""
    td_cands = [t for t in range(d_pad, 0, -128) if d_pad % t == 0]
    n_pad_full = _round_up(n, 8)
    tn_cands = [n_pad_full] + [t for t in (1024, 512, 256, 128, 64, 32, 16, 8)
                               if t < n_pad_full]
    for td in td_cands:
        for tn in tn_cands:
            if _tile_working_set_bytes(tn, td, k_pad, out_bytes) <= budget:
                return tn, td
    return 8, 128


def _embeddings_kernel(patch_ref, w_ref, posb_ref, out_ref):
    # patch_ref: (TN, K_pad)  bf16  patch rows for this (row-tile, batch)
    # w_ref:     (K_pad, TD)  bf16  flattened conv weight (one D-tile, resident)
    # posb_ref:  (TN, TD)     f32   position embedding + conv bias (resident
    #                               across the inner batch axis)
    # out_ref:   (TN, TD)     out_dtype
    acc = jnp.dot(patch_ref[...], w_ref[...],
                  preferred_element_type=jnp.float32)        # MXU, f32 accumulate
    out_ref[...] = (acc + posb_ref[...]).astype(out_ref.dtype)


def embeddings_forward(x_nchw, conv_w, conv_b, pos_emb, patch_size,
                       *, out_dtype=jnp.float32):
    """x_nchw: (B, C, H, W) f32; conv_w: (D, C, P, P); conv_b: (D,);
       pos_emb: (1, N, D).  Returns (B, N, D) out_dtype (default f32)."""
    B, C, H, W = x_nchw.shape
    P = patch_size
    D = conv_w.shape[0]
    Hp, Wp = H // P, W // P
    N = Hp * Wp
    K = C * P * P

    # --- padded / tiled geometry, sized from VMEM at trace time -------------
    K_pad = _round_up(K, 128)
    D_pad = _round_up(D, 128)
    out_bytes = jnp.dtype(out_dtype).itemsize

    vmem_cap = _vmem_capacity_bytes()
    budget = int(vmem_cap * 0.6)                 # leave room for compiler scratch
    TN, TD = _choose_tiles(N, D_pad, K_pad, out_bytes, budget)
    N_pad = _round_up(N, TN)

    working_set = _tile_working_set_bytes(TN, TD, K_pad, out_bytes)
    vmem_limit = min(vmem_cap, max(int(working_set * 1.25) + (4 << 20), 16 << 20))

    # --- glue: extract non-overlapping patches -> (B, N, K), K = (C, ph, pw) -
    # bf16-first so the shuffle moves 2-byte elements; allow_input_fusion lets
    # XLA fold pad/cast (and ideally the transpose) into the pallas input DMA.
    xb = x_nchw.astype(jnp.bfloat16)
    patches = xb.reshape(B, C, Hp, P, Wp, P)
    patches = patches.transpose(0, 2, 4, 1, 3, 5).reshape(B, N, K)
    patches = jnp.pad(patches, ((0, 0), (0, N_pad - N), (0, K_pad - K)))

    # flattened conv weight, zero-padded (zero rows keep the contraction exact)
    w_mat = conv_w.reshape(D, K).T.astype(jnp.float32)          # (K, D)
    w_mat = jnp.pad(w_mat, ((0, K_pad - K), (0, D_pad - D))).astype(jnp.bfloat16)

    # fold the conv bias into the position embedding once (exact, f32)
    posb = pos_emb.reshape(N, D).astype(jnp.float32) + conv_b.reshape(1, D).astype(jnp.float32)
    posb = jnp.pad(posb, ((0, N_pad - N), (0, D_pad - D)))      # (N_pad, D_pad) f32

    # batch innermost -> weight tile re-fetched only when the D-tile changes,
    # posb tile re-fetched only when the (row, D) tile changes; both stay
    # resident across batch. All axes independent -> "parallel" (megacore).
    grid = (D_pad // TD, N_pad // TN, B)

    out = pl.pallas_call(
        _embeddings_kernel,
        out_shape=jax.ShapeDtypeStruct((B, N_pad, D_pad), out_dtype),
        grid_spec=pltpu.PrefetchScalarGridSpec(
            num_scalar_prefetch=0,
            grid=grid,
            in_specs=[
                # per-(row-tile, batch) patches; leading batch dim squeezed
                pl.BlockSpec((None, TN, K_pad), lambda d, j, b: (b, j, 0)),
                # weight D-tile, resident across row tiles and batch
                pl.BlockSpec((K_pad, TD), lambda d, j, b: (0, d)),
                # position embedding (+bias) tile, resident across batch
                pl.BlockSpec((TN, TD), lambda d, j, b: (j, d)),
            ],
            out_specs=pl.BlockSpec((None, TN, TD), lambda d, j, b: (b, j, d)),
        ),
        compiler_params=pltpu.CompilerParams(
            dimension_semantics=("parallel", "parallel", "parallel"),
            vmem_limit_bytes=vmem_limit,
            allow_input_fusion=[True, False, False],
        ),
    )(patches, w_mat, posb)

    # strip the alignment padding
    return out[:, :N, :D]


def reference_forward(x_nchw, conv_w, conv_b, pos_emb, patch_size):
    # Plain-JAX f32 reference: Conv2d(kernel=stride=patch) -> flatten -> transpose -> +pos
    y = jax.lax.conv_general_dilated(
        x_nchw, conv_w,
        window_strides=(patch_size, patch_size),
        padding="VALID",
        dimension_numbers=("NCHW", "OIHW", "NCHW"))
    y = y + conv_b.reshape(1, -1, 1, 1)
    B, D, Hp, Wp = y.shape
    y = y.reshape(B, D, Hp * Wp).transpose(0, 2, 1)   # (B, N, D)
    return y + pos_emb


if __name__ == "__main__":
    # Small synthetic config consistent with the module:
    #   img_size=16, in_channels=4, patch_size=4, hidden_size=32  -> n_patches=16
    B, C, H, W = 2, 4, 16, 16
    P = 4
    D = 32
    N = (H // P) * (W // P)

    key = jax.random.PRNGKey(0)
    kx, kw, kb, kp = jax.random.split(key, 4)

    x = jax.random.normal(kx, (B, C, H, W), dtype=jnp.float32)
    conv_w = jax.random.normal(kw, (D, C, P, P), dtype=jnp.float32) * 0.05
    conv_b = jax.random.normal(kb, (D,), dtype=jnp.float32) * 0.05
    # trunc_normal_(std=0.02) approximated deterministically with a clipped normal
    pos_emb = jnp.clip(jax.random.normal(kp, (1, N, D), dtype=jnp.float32) * 0.02,
                       -0.04, 0.04)

    out = embeddings_forward(x, conv_w, conv_b, pos_emb, P)
    out = jax.block_until_ready(out)

    ref = reference_forward(x, conv_w, conv_b, pos_emb, P)
    assert out.shape == (B, N, D)
    # bf16 matmul operands with f32 accumulation -> loosened tolerance vs f32 conv
    # (for un-normalized image data the error grows; make the cast configurable then)
    assert jnp.allclose(out, ref, atol=2e-2, rtol=2e-2), "mismatch vs reference"

    print("KERNEL_OK")
</pallas_src>

<mosaic_0001>
module attributes {stable_mosaic.version = 11 : i64} {
  func.func @_embeddings_kernel(%arg0: i32, %arg1: i32, %arg2: i32, %arg3: memref<1x16x128xbf16, #tpu.memory_space<vmem>>, %arg4: memref<128x128xbf16, #tpu.memory_space<vmem>>, %arg5: memref<16x128xf32, #tpu.memory_space<vmem>>, %arg6: memref<1x16x128xf32, #tpu.memory_space<vmem>>) attributes {dimension_semantics = [#tpu.dimension_semantics<parallel>, #tpu.dimension_semantics<parallel>, #tpu.dimension_semantics<parallel>], iteration_bounds = array<i64: 1, 1, 2>, scalar_prefetch = 0 : i64, scratch_operands = 0 : i64, tpu.core_type = #tpu.core_type<tc>, window_params = [{transform_indices = @transform_0, window_bounds = array<i64: 1, 16, 128>}, {transform_indices = @transform_1, window_bounds = array<i64: 128, 128>}, {transform_indices = @transform_2, window_bounds = array<i64: 16, 128>}, {transform_indices = @transform_3, window_bounds = array<i64: 1, 16, 128>}]} {
    %c0 = arith.constant 0 : index
    %c0_0 = arith.constant 0 : index
    %c0_1 = arith.constant 0 : index
    %0 = vector.load %arg3[%c0, %c0_0, %c0_1] : memref<1x16x128xbf16, #tpu.memory_space<vmem>>, vector<1x16x128xbf16>
    %1 = vector.shape_cast %0 : vector<1x16x128xbf16> to vector<16x128xbf16>
    %c0_2 = arith.constant 0 : index
    %c0_3 = arith.constant 0 : index
    %2 = vector.load %arg4[%c0_2, %c0_3] : memref<128x128xbf16, #tpu.memory_space<vmem>>, vector<128x128xbf16>
    %cst = arith.constant dense<0.000000e+00> : vector<16x128xf32>
    %3 = tpu.matmul %1, %2, %cst {dimension_numbers = #tpu.dot_dimension_numbers<[1], [0], [0], [1], [0, 0, 1, 1], [], []>} : vector<16x128xbf16>, vector<128x128xbf16>, vector<16x128xf32> -> vector<16x128xf32>
    %c0_4 = arith.constant 0 : index
    %c0_5 = arith.constant 0 : index
    %4 = vector.load %arg5[%c0_4, %c0_5] : memref<16x128xf32, #tpu.memory_space<vmem>>, vector<16x128xf32>
    %5 = arith.addf %3, %4 : vector<16x128xf32>
    %c0_6 = arith.constant 0 : index
    %c0_7 = arith.constant 0 : index
    %c0_8 = arith.constant 0 : index
    %6 = vector.load %arg6[%c0_6, %c0_7, %c0_8] : memref<1x16x128xf32, #tpu.memory_space<vmem>>, vector<1x16x128xf32>
    %7 = vector.shape_cast %6 : vector<1x16x128xf32> to vector<16x128xf32>
    %8 = vector.shape_cast %5 : vector<16x128xf32> to vector<1x16x128xf32>
    tpu.vector_store %arg6[%c0_6, %c0_7, %c0_8], %8 {strides = array<i32>} : memref<1x16x128xf32, #tpu.memory_space<vmem>>, vector<1x16x128xf32>,
    return
  }
  func.func @transform_0(%arg0: i32, %arg1: i32, %arg2: i32) -> (i32, i32, i32) {
    %c0_i32 = arith.constant 0 : i32
    %c0_i32_0 = arith.constant 0 : i32
    return %arg2, %arg1, %c0_i32 : i32, i32, i32
  }
  func.func @transform_1(%arg0: i32, %arg1: i32, %arg2: i32) -> (i32, i32) {
    %c0_i32 = arith.constant 0 : i32
    %c0_i32_0 = arith.constant 0 : i32
    return %c0_i32, %arg0 : i32, i32
  }
  func.func @transform_2(%arg0: i32, %arg1: i32, %arg2: i32) -> (i32, i32) {
    %c0_i32 = arith.constant 0 : i32
    return %arg1, %arg0 : i32, i32
  }
  func.func @transform_3(%arg0: i32, %arg1: i32, %arg2: i32) -> (i32, i32, i32) {
    %c0_i32 = arith.constant 0 : i32
    return %arg2, %arg1, %arg0 : i32, i32, i32
  }
}

</mosaic_0001>

<llo_original>
// kernel: tpu_custom_call.1
$region0: #{tpu_custom_call.1}
  #allocation0 [shape = 'u32[]', space=smem, size = 0x4, offset = 0x4, fixed_abs, tag = 'smem constant byte address 0x4 - core index']
  #allocation1 [shape = 'u32[72,128]{1,0:T(1,128)}', space=vmem, size = 0x9000, scoped, tag = 'internal scratch']
  %s0 = inlined_call_operand.hbm [shape: bf16[2,16,128], index: 0, kind: input, shape index: {}]
  %s1 = inlined_call_operand.hbm [shape: bf16[128,128], index: 1, kind: input, shape index: {}]
  %s2 = inlined_call_operand.hbm [shape: f32[16,128], index: 2, kind: input, shape index: {}]
  %s3 = inlined_call_operand.hbm [shape: f32[2,16,128], index: 3, kind: output, shape index: {}]
  %s4 = sld [smem:[#allocation0]]
  $region57: #{tpu_custom_call.1} parent=0
    _
  %s6 = ssub.s32 1, %s4
  %s7 = scalar_select 0, %s6, %s4
  $region1: #{tpu_custom_call.1} parent=0
    #allocation2 [shape = 'u8[8192]{0}', space=vmem, size = 0x2000, scoped, tag = 'input window, operand 0']
    #allocation3 [shape = 's32[2]{0}', space=sflag, size = 0x8, scoped, tag = 'scoped memory for tpu_custom_call.1']
    #allocation4 [shape = 's32[2]{0}', space=sflag, size = 0x8, scoped, tag = 'scoped memory for tpu_custom_call.1']
    #allocation5 [shape = 'u8[32768]{0}', space=vmem, size = 0x8000, scoped, tag = 'input window, operand 1, single buffered']
    #allocation6 [shape = 's32[1]{0}', space=sflag, size = 0x4, scoped, tag = 'scoped memory for tpu_custom_call.1']
    #allocation7 [shape = 'u8[8192]{0}', space=vmem, size = 0x2000, scoped, tag = 'input window, operand 2, single buffered']
    #allocation8 [shape = 'u8[16384]{0}', space=vmem, size = 0x4000, scoped, tag = 'output window, operand 0']
    %8 = vsyncpa [#allocation3], 0
    %s9 = scalar_lea.sflag [#allocation3], 1
    %10 = vsyncpa %s9, 0
    %11 = vsyncpa [#allocation6], 0
    %12 = vsyncpa [#allocation4], 0
    %s13 = scalar_lea.sflag [#allocation4], 1
    %14 = vsyncpa %s13, 0
    loop: start=0, step=1, limit=4
    $region2: #{tpu_custom_call.1} parent=1 // loop_pre_header
      _
    $region3: #{tpu_custom_call.1} parent=1 // loop_header
      %s16 = sphi 0, %s20
      %p17 = scmp.ge.s32.totalorder %s16, 4
      %s23 = sphi 0, %s42
      %s24 = sphi 0, %s38
      %s25 = sphi 0, %s34
      %s26 = sphi 0, %s23
      %s27 = sphi 0, %s24
      %s28 = sphi 0, %s25
      %s29 = sphi 0, %s26
      %s30 = sphi 0, %s27
      %s31 = sphi 0, %s28
      %s47 = sphi 0, %s49
      %s50 = sphi 0, %s47
      %s51 = sphi 0, %s50
      %s67 = sphi 0, %s51
      %s73 = sphi 0, %s75
      %s76 = sphi 0, %s73
      %s77 = sphi 0, %s76
      %s93 = sphi 0, %s77
      %s101 = sphi 0, %s103
      %s104 = sphi 0, %s101
      %s105 = sphi 0, %s104
      %s121 = sphi 0, %s105
      %s131 = sphi 0, %s133
      %s134 = sphi 0, %s131
      %s135 = sphi 0, %s134
      %s151 = sphi 0, %s135
    $region4: #{tpu_custom_call.1} parent=1 // loop_header_branch
      %19 = sbr.rel (%p17) target = $region8
    $region5: #{tpu_custom_call.1} parent=1 // loop_body
      %s21 = ssub.s32 %s16, 1
      %s22 = ssub.s32 %s16, 2
      %s32 = sadd.s32 1, %s25
      %p33 = scmp.ge.s32.totalorder %s32, 2
      %s34 = scalar_select %p33, 0, %s32
      %s35 = sadd.s32 1, %s24
      %s36 = scalar_select %p33, %s35, %s24
      %p37 = scmp.ge.s32.totalorder %s36, 1
      %s38 = scalar_select %p37, 0, %s36
      %s39 = sadd.s32 1, %s23
      %s40 = scalar_select %p37, %s39, %s23
      %p41 = scmp.ge.s32.totalorder %s40, 1
      %s42 = scalar_select %p41, 0, %s40
      %s43 = ssub.s32 %s25, %s34
      %s44 = ssub.s32 %s24, %s38
      %s45 = sor.u32 %s43, %s44
      %p46 = scmp.eq.s32.totalorder %s45, 0
      %s48 = sadd.s32 %s47, 1
      %s49 = scalar_select %p46, %s47, %s48
      %p52 = pneg %p46
      %p53 = scmp.eq.s32.totalorder %s16, 1
      %p54 = por %p52, %p53
      %p55 = scmp.ne.s32.totalorder %s47, %s50
      %p56 = scmp.eq.s32.totalorder %s16, 0
      %p57 = por %p55, %p56
      %p58 = scmp.ne.s32.totalorder %s47, %s50
      %p59 = scmp.eq.s32.totalorder %s21, 1
      %p60 = por %p58, %p59
      %p61 = scmp.ne.s32.totalorder %s50, %s51
      %p62 = scmp.eq.s32.totalorder %s21, 0
      %p63 = por %p61, %p62
      %p64 = scmp.ne.s32.totalorder %s50, %s51
      %p65 = scmp.eq.s32.totalorder %s22, 1
      %p66 = por %p64, %p65
      %p68 = scmp.ne.s32.totalorder %s51, %s67
      %p69 = scmp.eq.s32.totalorder %s22, 0
      %p70 = por %p68, %p69
      %s71 = ssub.s32 %s23, %s42
      %p72 = scmp.eq.s32.totalorder %s71, 0
      %s74 = sadd.s32 %s73, 1
      %s75 = scalar_select %p72, %s73, %s74
      %p78 = pneg %p72
      %p79 = scmp.eq.s32.totalorder %s16, 1
      %p80 = por %p78, %p79
      %p81 = scmp.ne.s32.totalorder %s73, %s76
      %p82 = scmp.eq.s32.totalorder %s16, 0
      %p83 = por %p81, %p82
      %p84 = scmp.ne.s32.totalorder %s73, %s76
      %p85 = scmp.eq.s32.totalorder %s21, 1
      %p86 = por %p84, %p85
      %p87 = scmp.ne.s32.totalorder %s76, %s77
      %p88 = scmp.eq.s32.totalorder %s21, 0
      %p89 = por %p87, %p88
      %p90 = scmp.ne.s32.totalorder %s76, %s77
      %p91 = scmp.eq.s32.totalorder %s22, 1
      %p92 = por %p90, %p91
      %p94 = scmp.ne.s32.totalorder %s77, %s93
      %p95 = scmp.eq.s32.totalorder %s22, 0
      %p96 = por %p94, %p95
      %s97 = ssub.s32 %s24, %s38
      %s98 = ssub.s32 %s23, %s42
      %s99 = sor.u32 %s97, %s98
      %p100 = scmp.eq.s32.totalorder %s99, 0
      %s102 = sadd.s32 %s101, 1
      %s103 = scalar_select %p100, %s101, %s102
      %p106 = pneg %p100
      %p107 = scmp.eq.s32.totalorder %s16, 1
      %p108 = por %p106, %p107
      %p109 = scmp.ne.s32.totalorder %s101, %s104
      %p110 = scmp.eq.s32.totalorder %s16, 0
      %p111 = por %p109, %p110
      %p112 = scmp.ne.s32.totalorder %s101, %s104
      %p113 = scmp.eq.s32.totalorder %s21, 1
      %p114 = por %p112, %p113
      %p115 = scmp.ne.s32.totalorder %s104, %s105
      %p116 = scmp.eq.s32.totalorder %s21, 0
      %p117 = por %p115, %p116
      %p118 = scmp.ne.s32.totalorder %s104, %s105
      %p119 = scmp.eq.s32.totalorder %s22, 1
      %p120 = por %p118, %p119
      %p122 = scmp.ne.s32.totalorder %s105, %s121
      %p123 = scmp.eq.s32.totalorder %s22, 0
      %p124 = por %p122, %p123
      %s125 = ssub.s32 %s25, %s34
      %s126 = ssub.s32 %s24, %s38
      %s127 = sor.u32 %s125, %s126
      %s128 = ssub.s32 %s23, %s42
      %s129 = sor.u32 %s127, %s128
      %p130 = scmp.eq.s32.totalorder %s129, 0
      %s132 = sadd.s32 %s131, 1
      %s133 = scalar_select %p130, %s131, %s132
      %p136 = pneg %p130
      %p137 = scmp.eq.s32.totalorder %s16, 1
      %p138 = por %p136, %p137
      %p139 = scmp.ne.s32.totalorder %s131, %s134
      %p140 = scmp.eq.s32.totalorder %s16, 0
      %p141 = por %p139, %p140
      %p142 = scmp.ne.s32.totalorder %s131, %s134
      %p143 = scmp.eq.s32.totalorder %s21, 1
      %p144 = por %p142, %p143
      %p145 = scmp.ne.s32.totalorder %s134, %s135
      %p146 = scmp.eq.s32.totalorder %s21, 0
      %p147 = por %p145, %p146
      %p148 = scmp.ne.s32.totalorder %s134, %s135
      %p149 = scmp.eq.s32.totalorder %s22, 1
      %p150 = por %p148, %p149
      %p152 = scmp.ne.s32.totalorder %s135, %s151
      %p153 = scmp.eq.s32.totalorder %s22, 0
      %p154 = por %p152, %p153
      %p155 = scmp.le.s32.totalorder 1, %s16
      %p156 = scmp.lt.s32.totalorder %s16, 3
      %p157 = pnand %p155, %p156
      %p158 = pneg %p157
      // Predicated region
      $region9: #{tpu_custom_call.1} parent=5 // pred_check
        _
      $region10: #{tpu_custom_call.1} parent=5 // pred_check_branch
        %160 = sbr.rel (%p157) target = $region12
      $region11: #{tpu_custom_call.1} parent=5 // pred_region
        %s161 = ssub.s32 %s16, 1
        // Predicated region
        $region13: #{tpu_custom_call.1} parent=11 // pred_check
          %p162 = pneg %p89
        $region14: #{tpu_custom_call.1} parent=11 // pred_check_branch
          %164 = sbr.rel (%p162) target = $region16
        $region15: #{tpu_custom_call.1} parent=11 // pred_region
          %166 = vsyncadd [#allocation6], 0
          %s167 = smul.addr %s26, 4
          %s168 = scalar_lea.hbm %s1, %s167
          %s169 = sshll.u32 %s168, 4
          %s170 = int_to_ptr.hbm [resolvable:$true] %s169
          %s171 = sshll.u32 [#allocation5], 4
          %s172 = int_to_ptr.vmem [resolvable:$true] %s171
          %177 = dma.hbm_to_vmem [thread:$0]  %s170, 1024, %s172, [#allocation6], 64, 64, 4
        $region16: #{tpu_custom_call.1} parent=11 // pred_fallthru
          _
        // Predicated region
        $region17: #{tpu_custom_call.1} parent=11 // pred_check
          %p178 = pneg %p117
        $region18: #{tpu_custom_call.1} parent=11 // pred_check_branch
          %180 = sbr.rel (%p178) target = $region20
        $region19: #{tpu_custom_call.1} parent=11 // pred_region
          %s181 = smul.u32 2, %s27
          %183 = vsyncadd [#allocation6], 0
          %s184 = sadd.s32 %s26, %s181
          %s185 = smul.addr %s184, 8
          %s186 = scalar_lea.hbm %s2, %s185
          %s187 = sshll.u32 %s186, 4
          %s188 = int_to_ptr.hbm [resolvable:$true] %s187
          %s189 = sshll.u32 [#allocation7], 4
          %s190 = int_to_ptr.vmem [resolvable:$true] %s189
          %195 = dma.hbm_to_vmem [thread:$0]  %s188, 256, %s190, [#allocation6], 128, 128, 8
        $region20: #{tpu_custom_call.1} parent=11 // pred_fallthru
          _
      $region12: #{tpu_custom_call.1} parent=5 // pred_fallthru
        _
      %p196 = scmp.lt.s32.totalorder %s16, 2
      // Predicated region
      $region21: #{tpu_custom_call.1} parent=5 // pred_check
        %p197 = pneg %p196
      $region22: #{tpu_custom_call.1} parent=5 // pred_check_branch
        %199 = sbr.rel (%p197) target = $region24
      $region23: #{tpu_custom_call.1} parent=5 // pred_region
        // Predicated region
        $region25: #{tpu_custom_call.1} parent=23 // pred_check
          %p200 = pneg %p57
        $region26: #{tpu_custom_call.1} parent=23 // pred_check_branch
          %202 = sbr.rel (%p200) target = $region28
        $region27: #{tpu_custom_call.1} parent=23 // pred_region
          %s203 = sand.u32 %s47, 1
          %s204 = scalar_lea.sflag [#allocation3], %s203
          %s205 = sand.u32 %s47, 1
          %s206 = smul.addr %s205, 8
          %s207 = scalar_lea.vmem [#allocation2], %s206
          %s208 = smul.u32 2, %s24
          %210 = vsyncadd %s204, 0
          %s211 = smul.addr %s25, 2
          %s212 = sadd.s32 %s208, %s211
          %s213 = smul.addr %s212, 4
          %s214 = scalar_lea.hbm %s0, %s213
          %s215 = sshll.u32 %s214, 4
          %s216 = int_to_ptr.hbm [resolvable:$true] %s215
          %s217 = sshll.u32 %s207, 4
          %s218 = int_to_ptr.vmem [resolvable:$true] %s217
          %223 = dma.hbm_to_vmem [thread:$0]  %s216, 128, %s218, %s204, 64, 64, 4
        $region28: #{tpu_custom_call.1} parent=23 // pred_fallthru
          _
      $region24: #{tpu_custom_call.1} parent=5 // pred_fallthru
        _
      %p224 = scmp.le.s32.totalorder 1, %s16
      %p225 = scmp.lt.s32.totalorder %s16, 3
      %p226 = pnand %p224, %p225
      %p227 = pneg %p226
      // Predicated region
      $region29: #{tpu_custom_call.1} parent=5 // pred_check
        _
      $region30: #{tpu_custom_call.1} parent=5 // pred_check_branch
        %229 = sbr.rel (%p226) target = $region32
      $region31: #{tpu_custom_call.1} parent=5 // pred_region
        %s230 = ssub.s32 %s16, 1
        %s231 = sand.u32 %s50, 1
        %s232 = scalar_lea.sflag [#allocation3], %s231
        %s233 = sand.u32 %s50, 1
        %s234 = smul.addr %s233, 8
        %s235 = scalar_lea.vmem [#allocation2], %s234
        // Predicated region
        $region33: #{tpu_custom_call.1} parent=31 // pred_check
          %p236 = pneg %p63
        $region34: #{tpu_custom_call.1} parent=31 // pred_check_branch
          %238 = sbr.rel (%p236) target = $region36
        $region35: #{tpu_custom_call.1} parent=31 // pred_region
          %240 = dma.done %s232, 128
        $region36: #{tpu_custom_call.1} parent=31 // pred_fallthru
          _
        // Predicated region
        $region37: #{tpu_custom_call.1} parent=31 // pred_check
          %p241 = pneg %p89
        $region38: #{tpu_custom_call.1} parent=31 // pred_check_branch
          %243 = sbr.rel (%p241) target = $region40
        $region39: #{tpu_custom_call.1} parent=31 // pred_region
          %245 = dma.done [#allocation6], 1024
        $region40: #{tpu_custom_call.1} parent=31 // pred_fallthru
          _
        // Predicated region
        $region41: #{tpu_custom_call.1} parent=31 // pred_check
          %p246 = pneg %p117
        $region42: #{tpu_custom_call.1} parent=31 // pred_check_branch
          %248 = sbr.rel (%p246) target = $region44
        $region43: #{tpu_custom_call.1} parent=31 // pred_region
          %250 = dma.done [#allocation6], 256
        $region44: #{tpu_custom_call.1} parent=31 // pred_fallthru
          _
        %s251 = sand.u32 %s50, 1
        %s252 = scalar_lea.sflag [#allocation3], %s251
        %s253 = sand.u32 %s50, 1
        %s254 = smul.addr %s253, 8
        %s255 = scalar_lea.vmem [#allocation2], %s254
        %p256 = pneg %p63
        %p257 = pneg %p60
        %p258 = pneg %p89
        %p259 = pneg %p86
        %p260 = pneg %p117
        %p261 = pneg %p114
        %p262 = pneg %p147
        %p263 = pneg %p144
        %s264 = sand.u32 %s134, 1
        %s265 = scalar_lea.sflag [#allocation4], %s264
        %s266 = sand.u32 %s134, 1
        %s267 = smul.addr %s266, 16
        %s268 = scalar_lea.vmem [#allocation8], %s267
        %s269 = smul.u32 2, %s27
        %s270 = smul.u32 2, %s27
        %s271 = smul.u32 2, %s27
        %v272 = vld [vmem:[%s235] sm:$0xf]
        %v273 = vld [vmem:[%s235 + $0x4] sm:$0xf]
        %v274 = vld [vmem:[#allocation5] sm:$0xf]
        %v275 = vld [vmem:[#allocation5 + $0x4] sm:$0xf]
        %v276 = vld [vmem:[#allocation5 + $0x8] sm:$0xf]
        %v277 = vld [vmem:[#allocation5 + $0xc] sm:$0xf]
        %v278 = vld [vmem:[#allocation5 + $0x10] sm:$0xf]
        %v279 = vld [vmem:[#allocation5 + $0x14] sm:$0xf]
        %v280 = vld [vmem:[#allocation5 + $0x18] sm:$0xf]
        %v281 = vld [vmem:[#allocation5 + $0x1c] sm:$0xf]
        %v282 = vld [vmem:[#allocation5 + $0x20] sm:$0xf]
        %v283 = vld [vmem:[#allocation5 + $0x24] sm:$0xf]
        %v284 = vld [vmem:[#allocation5 + $0x28] sm:$0xf]
        %v285 = vld [vmem:[#allocation5 + $0x2c] sm:$0xf]
        %v286 = vld [vmem:[#allocation5 + $0x30] sm:$0xf]
        %v287 = vld [vmem:[#allocation5 + $0x34] sm:$0xf]
        %v288 = vld [vmem:[#allocation5 + $0x38] sm:$0xf]
        %v289 = vld [vmem:[#allocation5 + $0x3c] sm:$0xf]
        %v290 = vld [vmem:[#allocation7] sm:$0xff]
        %v291 = vld [vmem:[#allocation7 + $0x8] sm:$0xff]
        %v294 = vunpack.c.l.b16 %v272
        %v295 = vunpack.c.l.b16 %v273
        %v296 = vpack.c.b16 %v295, %v294
        %v314 = vunpack.c.l.b16 %v274
        %v315 = vunpack.c.l.b16 %v275
        %v316 = vunpack.c.l.b16 %v276
        %v317 = vunpack.c.l.b16 %v277
        %v318 = vunpack.c.l.b16 %v278
        %v319 = vunpack.c.l.b16 %v279
        %v320 = vunpack.c.l.b16 %v280
        %v321 = vunpack.c.l.b16 %v281
        %v322 = vunpack.c.l.b16 %v282
        %v323 = vunpack.c.l.b16 %v283
        %v324 = vunpack.c.l.b16 %v284
        %v325 = vunpack.c.l.b16 %v285
        %v326 = vunpack.c.l.b16 %v286
        %v327 = vunpack.c.l.b16 %v287
        %v328 = vunpack.c.l.b16 %v288
        %v329 = vunpack.c.l.b16 %v289
        %v330 = vpack.c.b16 %v315, %v314
        %v331 = vpack.c.b16 %v317, %v316
        %v332 = vpack.c.b16 %v319, %v318
        %v333 = vpack.c.b16 %v321, %v320
        %v334 = vpack.c.b16 %v323, %v322
        %v335 = vpack.c.b16 %v325, %v324
        %v336 = vpack.c.b16 %v327, %v326
        %v337 = vpack.c.b16 %v329, %v328
        %346 = vmatpush.bf16.msra.mxu0 %v337
        %347 = vmatpush.bf16.msra.mxu0 %v336
        %348 = vmatpush.bf16.msra.mxu0 %v335
        %349 = vmatpush.bf16.msra.mxu0 %v334
        %350 = vmatpush.bf16.msra.mxu0 %v333
        %351 = vmatpush.bf16.msra.mxu0 %v332
        %352 = vmatpush.bf16.msra.mxu0 %v331
        %353 = vmatpush.bf16.msra.mxu0 %v330
        %354 = vmatmul.bf16.gmra.mxu0 %v296
        %v355 = vpop.f32.mrf.mxu0
        %v356 = vadd.f32 %v290, %v355
        %v357 = vpop.f32.mrf.mxu0
        %v358 = vadd.f32 %v291, %v357
        %359 = vdwg.mxu0
        %360 = vst [vmem:[%s268] sm:$0xff] %v356
        %361 = vst [vmem:[%s268 + $0x8] sm:$0xff] %v358
        %s362 = sand.u32 %s134, 1
        %s363 = scalar_lea.sflag [#allocation4], %s362
        %s364 = sand.u32 %s134, 1
        %s365 = smul.addr %s364, 16
        %s366 = scalar_lea.vmem [#allocation8], %s365
        // Predicated region
        $region45: #{tpu_custom_call.1} parent=31 // pred_check
          %p367 = pneg %p144
        $region46: #{tpu_custom_call.1} parent=31 // pred_check_branch
          %369 = sbr.rel (%p367) target = $region48
        $region47: #{tpu_custom_call.1} parent=31 // pred_region
          %s370 = smul.u32 2, %s27
          %372 = vsyncadd %s363, 0
          %s373 = sadd.s32 %s26, %s370
          %s374 = smul.addr %s28, 2
          %s375 = sadd.s32 %s373, %s374
          %s376 = smul.addr %s375, 8
          %s377 = scalar_lea.hbm %s3, %s376
          %s378 = sshll.u32 %s366, 4
          %s379 = int_to_ptr.vmem [resolvable:$true] %s378
          %s380 = sshll.u32 %s377, 4
          %s381 = int_to_ptr.hbm [resolvable:$true] %s380
          %386 = dma.vmem_to_hbm [thread:$0]  %s379, 256, %s381, %s363, 128, 128, 8
        $region48: #{tpu_custom_call.1} parent=31 // pred_fallthru
          _
      $region32: #{tpu_custom_call.1} parent=5 // pred_fallthru
        _
      %p387 = scmp.le.s32.totalorder 2, %s16
      // Predicated region
      $region49: #{tpu_custom_call.1} parent=5 // pred_check
        %p388 = pneg %p387
      $region50: #{tpu_custom_call.1} parent=5 // pred_check_branch
        %390 = sbr.rel (%p388) target = $region52
      $region51: #{tpu_custom_call.1} parent=5 // pred_region
        %s391 = ssub.s32 %s16, 2
        // Predicated region
        $region53: #{tpu_custom_call.1} parent=51 // pred_check
          %p392 = pneg %p150
        $region54: #{tpu_custom_call.1} parent=51 // pred_check_branch
          %394 = sbr.rel (%p392) target = $region56
        $region55: #{tpu_custom_call.1} parent=51 // pred_region
          %s395 = sand.u32 %s135, 1
          %s396 = scalar_lea.sflag [#allocation4], %s395
          %s397 = sand.u32 %s135, 1
          %s398 = smul.addr %s397, 16
          %s399 = scalar_lea.vmem [#allocation8], %s398
          %401 = dma.done %s396, 256
        $region56: #{tpu_custom_call.1} parent=51 // pred_fallthru
          _
      $region52: #{tpu_custom_call.1} parent=5 // pred_fallthru
        _
    $region6: #{tpu_custom_call.1} parent=1 // loop_footer
      %s20 = sadd.s32 1, %s16
    $region7: #{tpu_custom_call.1} parent=1 // loop_footer_branch
      %15 = sbr.rel target = $region3
    $region8: #{tpu_custom_call.1} parent=1 // loop_exit
      _
    %402 = vsyncpa [#allocation3], 1
    %s403 = scalar_lea.sflag [#allocation3], 1
    %404 = vsyncpa %s403, 1
    %405 = vsyncpa [#allocation6], 1
    %406 = vsyncpa [#allocation4], 1
    %s407 = scalar_lea.sflag [#allocation4], 1
    %408 = vsyncpa %s407, 1

</llo_original>
